<compile_context>
chip_gen: v5e
topology: v5e:2x2
jax: 0.10.0
libtpu: 0.0.40
codegen_flags: <defaults>
</compile_context>

<pallas_src>
import functools

import jax
import jax.numpy as jnp
from jax.experimental import pallas as pl
from jax.experimental.pallas import tpu as pltpu

BN_EPS = 1e-5
TM_STREAM = 512                 # batch-tile rows for the streamed path
FUSED_VMEM_BUDGET = 12 << 20    # conservative: fits every generation's default
                                # scoped VMEM (16 MiB v5e, 32 MiB v6e/v7x)


def _round_up(n, m):
    return ((n + m - 1) // m) * m


# -----------------------------------------------------------------------------
# Fully fused path (whole batch resident in VMEM)
# -----------------------------------------------------------------------------
def _fused_kernel(x_ref, w1_ref, b1_ref, g1_ref, be1_ref,
                  w2_ref, b2_ref, g2_ref, be2_ref,
                  w3_ref, b3_ref, g3_ref, be3_ref,
                  w4_ref, b4_ref, o_ref, *, inv_n):
    def layer(h, w_ref, b_ref, g_ref, be_ref):
        h = jnp.dot(h, w_ref[...], preferred_element_type=jnp.float32)
        h = jnp.maximum(h + b_ref[...], 0.0)                  # Linear + ReLU
        mean = jnp.sum(h, axis=0, keepdims=True) * inv_n
        cen = h - mean                                        # two-pass variance
        var = jnp.sum(cen * cen, axis=0, keepdims=True) * inv_n
        scale = jax.lax.rsqrt(var + BN_EPS) * g_ref[...]
        return cen * scale + be_ref[...]                      # BN (Dropout = id)

    h = layer(x_ref[...], w1_ref, b1_ref, g1_ref, be1_ref)
    h = layer(h, w2_ref, b2_ref, g2_ref, be2_ref)
    h = layer(h, w3_ref, b3_ref, g3_ref, be3_ref)
    # N=1 final linear: VPU multiply + lane (XLU) reduction; sigmoid on the EUP.
    y = jnp.sum(h * w4_ref[...], axis=-1, keepdims=True) + b4_ref[0]
    o_ref[...] = jax.nn.sigmoid(y)


def _forward_fused(x, params):
    (w1, b1, g1, be1, w2, b2, g2, be2, w3, b3, g3, be3, w4, b4) = params
    B, d_in = x.shape
    f1, f2, f3 = w1.shape[1], w2.shape[1], w3.shape[1]
    w4row = w4.reshape(1, f3)
    b4s = b4.reshape((1,))

    vmem = pl.BlockSpec(memory_space=pltpu.MemorySpace.VMEM)
    smem = pl.BlockSpec(memory_space=pltpu.MemorySpace.SMEM)
    flops = 2 * B * (d_in * f1 + f1 * f2 + f2 * f3 + f3) \
        + 10 * B * (f1 + f2 + f3)
    bytes_accessed = 4 * (B * d_in + d_in * f1 + f1 * f2 + f2 * f3
                          + 5 * (f1 + f2 + f3) + B + 1)

    return pl.pallas_call(
        functools.partial(_fused_kernel, inv_n=1.0 / B),
        out_shape=jax.ShapeDtypeStruct((B, 1), jnp.float32),
        in_specs=[vmem] * 14 + [smem],
        out_specs=vmem,
        cost_estimate=pl.CostEstimate(flops=flops, transcendentals=B,
                                      bytes_accessed=bytes_accessed),
    )(x, w1, b1, g1, be1, w2, b2, g2, be2, w3, b3, g3, be3, w4row, b4s)


# -----------------------------------------------------------------------------
# Streamed path (large batches): batch-tiled kernels + XLA BN-affine / tail
# -----------------------------------------------------------------------------
def _first_kernel(x_ref, w_ref, b_ref, h_ref, s_ref, ss_ref,
                  *, tm, b_real, need_mask):
    """h = relu(x @ w + b); accumulate sum / sumsq of h over real batch rows."""
    i = pl.program_id(0)

    @pl.when(i == 0)
    def _():
        s_ref[...] = jnp.zeros_like(s_ref)
        ss_ref[...] = jnp.zeros_like(ss_ref)

    h = jnp.dot(x_ref[...], w_ref[...], preferred_element_type=jnp.float32)
    h = jnp.maximum(h + b_ref[...], 0.0)
    h_ref[...] = h

    if need_mask:  # zero-padded batch rows give relu(b) != 0 -> exclude them
        row = jax.lax.broadcasted_iota(jnp.int32, (tm, 1), 0) + i * tm
        h = jnp.where(row < b_real, h, 0.0)
    s_ref[...] += jnp.sum(h, axis=0, keepdims=True)
    ss_ref[...] += jnp.sum(h * h, axis=0, keepdims=True)


def _mid_kernel(h_ref, sc_ref, sh_ref, w_ref, b_ref, o_ref, s_ref, ss_ref,
                *, tm, b_real, need_mask):
    """hn = h*scale + shift (BN of previous layer); o = relu(hn @ w + b); stats."""
    i = pl.program_id(0)

    @pl.when(i == 0)
    def _():
        s_ref[...] = jnp.zeros_like(s_ref)
        ss_ref[...] = jnp.zeros_like(ss_ref)

    hn = h_ref[...] * sc_ref[...] + sh_ref[...]
    h = jnp.dot(hn, w_ref[...], preferred_element_type=jnp.float32)
    h = jnp.maximum(h + b_ref[...], 0.0)
    o_ref[...] = h

    if need_mask:  # padded rows carry garbage; keep them out of the statistics
        row = jax.lax.broadcasted_iota(jnp.int32, (tm, 1), 0) + i * tm
        h = jnp.where(row < b_real, h, 0.0)
    s_ref[...] += jnp.sum(h, axis=0, keepdims=True)
    ss_ref[...] += jnp.sum(h * h, axis=0, keepdims=True)


def _const2(shape):
    return pl.BlockSpec(shape, lambda i: (0, 0))


def _call_first(xp, w, b, *, tm, b_real, need_mask):
    bp, d_in = xp.shape
    f = w.shape[1]
    kern = functools.partial(_first_kernel, tm=tm, b_real=b_real,
                             need_mask=need_mask)
    flops = 2 * bp * d_in * f + 6 * bp * f
    bytes_accessed = 4 * (bp * d_in + d_in * f + f + bp * f + 2 * f)
    return pl.pallas_call(
        kern,
        grid=(bp // tm,),
        in_specs=[
            pl.BlockSpec((tm, d_in), lambda i: (i, 0)),   # x read unpadded
            _const2((d_in, f)),                           # weights VMEM-resident
            _const2((1, f)),
        ],
        out_specs=[
            pl.BlockSpec((tm, f), lambda i: (i, 0)),      # h at true width
            _const2((1, f)),                              # sum accumulator
            _const2((1, f)),                              # sumsq accumulator
        ],
        out_shape=[
            jax.ShapeDtypeStruct((bp, f), jnp.float32),
            jax.ShapeDtypeStruct((1, f), jnp.float32),
            jax.ShapeDtypeStruct((1, f), jnp.float32),
        ],
        compiler_params=pltpu.CompilerParams(
            # VMEM-resident stat accumulators make the batch axis a reduction.
            dimension_semantics=("arbitrary",)),
        cost_estimate=pl.CostEstimate(flops=flops, transcendentals=0,
                                      bytes_accessed=bytes_accessed),
    )(xp, w, b)


def _call_mid(h, sc, sh, w, b, *, tm, b_real, need_mask):
    bp, fin = h.shape
    fout = w.shape[1]
    kern = functools.partial(_mid_kernel, tm=tm, b_real=b_real,
                             need_mask=need_mask)
    flops = 2 * bp * fin * fout + 2 * bp * fin + 6 * bp * fout
    bytes_accessed = 4 * (bp * fin + 2 * fin + fin * fout + fout
                          + bp * fout + 2 * fout)
    return pl.pallas_call(
        kern,
        grid=(bp // tm,),
        in_specs=[
            pl.BlockSpec((tm, fin), lambda i: (i, 0)),
            _const2((1, fin)),                            # BN scale (hoisted)
            _const2((1, fin)),                            # BN shift (hoisted)
            _const2((fin, fout)),
            _const2((1, fout)),
        ],
        out_specs=[
            pl.BlockSpec((tm, fout), lambda i: (i, 0)),
            _const2((1, fout)),
            _const2((1, fout)),
        ],
        out_shape=[
            jax.ShapeDtypeStruct((bp, fout), jnp.float32),
            jax.ShapeDtypeStruct((1, fout), jnp.float32),
            jax.ShapeDtypeStruct((1, fout), jnp.float32),
        ],
        compiler_params=pltpu.CompilerParams(
            dimension_semantics=("arbitrary",)),
        cost_estimate=pl.CostEstimate(flops=flops, transcendentals=0,
                                      bytes_accessed=bytes_accessed),
    )(h, sc, sh, w, b)


def _bn_scale_shift(s, ss, gamma, beta, n):
    """Single-pass stats -> BN affine; variance clamped against f32 cancellation."""
    mean = s / n
    var = jnp.maximum(ss / n - mean * mean, 0.0)
    scale = jax.lax.rsqrt(var + BN_EPS) * gamma
    shift = beta - mean * scale
    return scale, shift


def _forward_streamed(x, params, *, tm=TM_STREAM):
    (w1, b1, g1, be1, w2, b2, g2, be2, w3, b3, g3, be3, w4, b4) = params
    B = x.shape[0]
    tm = min(tm, _round_up(max(B, 8), 8))
    bp = _round_up(B, tm)
    need_mask = bp != B
    xp = jnp.pad(x, ((0, bp - B), (0, 0))) if need_mask else x

    h1, s1, ss1 = _call_first(xp, w1, b1, tm=tm, b_real=B, need_mask=need_mask)
    sc1, sh1 = _bn_scale_shift(s1, ss1, g1, be1, B)
    h2, s2, ss2 = _call_mid(h1, sc1, sh1, w2, b2, tm=tm, b_real=B,
                            need_mask=need_mask)
    sc2, sh2 = _bn_scale_shift(s2, ss2, g2, be2, B)
    h3, s3, ss3 = _call_mid(h2, sc2, sh2, w3, b3, tm=tm, b_real=B,
                            need_mask=need_mask)
    sc3, sh3 = _bn_scale_shift(s3, ss3, g3, be3, B)
    # Trivial tail (BN3-apply + N=1 linear + sigmoid) in plain XLA: same HBM
    # read of h3, no 128-wide broadcast-slab write, no extra kernel launch.
    h3n = h3[:B] * sc3 + sh3
    return jax.nn.sigmoid(h3n @ w4 + b4)


# -----------------------------------------------------------------------------
# Public entry point
# -----------------------------------------------------------------------------
def mlp_forward(x, params):
    """Forward pass matching Model.forward (training-mode BN, dropout = id)."""
    (w1, b1, g1, be1, w2, b2, g2, be2, w3, b3, g3, be3, w4, b4) = params
    B, d_in = x.shape
    f1, f2, f3 = w1.shape[1], w2.shape[1], w3.shape[1]
    # Pessimistic all-live VMEM estimate for the fused path: x + h1 + h2 + h3
    # plus all weights, in f32.
    est = 4 * (B * (d_in + f1 + f2 + f3)
               + d_in * f1 + f1 * f2 + f2 * f3 + f3)
    if est <= FUSED_VMEM_BUDGET:
        return _forward_fused(x, params)
    return _forward_streamed(x, params)


# -----------------------------------------------------------------------------
# Parameter init (PyTorch-style) and pure-JAX reference
# -----------------------------------------------------------------------------
def init_params(key, input_size, lin1_out, lin2_out, lin3_out):
    """Uniform +/- 1/sqrt(fan_in) init; weights pre-transposed to (in, out)."""
    def linear(k, fan_in, fan_out):
        kw, kb = jax.random.split(k)
        bound = 1.0 / jnp.sqrt(fan_in)
        w = jax.random.uniform(kw, (fan_in, fan_out), jnp.float32, -bound, bound)
        b = jax.random.uniform(kb, (1, fan_out), jnp.float32, -bound, bound)
        return w, b

    k1, k2, k3, k4 = jax.random.split(key, 4)
    w1, b1 = linear(k1, input_size, lin1_out)
    w2, b2 = linear(k2, lin1_out, lin2_out)
    w3, b3 = linear(k3, lin2_out, lin3_out)
    w4, b4 = linear(k4, lin3_out, 1)
    g1, be1 = jnp.ones((1, lin1_out), jnp.float32), jnp.zeros((1, lin1_out), jnp.float32)
    g2, be2 = jnp.ones((1, lin2_out), jnp.float32), jnp.zeros((1, lin2_out), jnp.float32)
    g3, be3 = jnp.ones((1, lin3_out), jnp.float32), jnp.zeros((1, lin3_out), jnp.float32)
    return (w1, b1, g1, be1, w2, b2, g2, be2, w3, b3, g3, be3, w4, b4)


def mlp_reference(x, params):
    (w1, b1, g1, be1, w2, b2, g2, be2, w3, b3, g3, be3, w4, b4) = params

    def bn(h, g, be):
        m = jnp.mean(h, axis=0, keepdims=True)
        v = jnp.mean((h - m) ** 2, axis=0, keepdims=True)
        return (h - m) / jnp.sqrt(v + BN_EPS) * g + be

    h = bn(jax.nn.relu(x @ w1 + b1), g1, be1)
    h = bn(jax.nn.relu(h @ w2 + b2), g2, be2)
    h = bn(jax.nn.relu(h @ w3 + b3), g3, be3)
    return jax.nn.sigmoid(h @ w4 + b4)


if __name__ == "__main__":
    input_size, lin1_out, lin2_out, lin3_out = 32, 64, 32, 16
    key = jax.random.PRNGKey(0)
    kx, kx2, kp = jax.random.split(key, 3)
    params = init_params(kp, input_size, lin1_out, lin2_out, lin3_out)

    # Fused path (small batch) -- the default entry point.
    x = jax.random.normal(kx, (8, input_size), jnp.float32)
    out = jax.block_until_ready(jax.jit(mlp_forward)(x, params))
    ref = mlp_reference(x, params)
    assert out.shape == (8, 1)
    assert jnp.allclose(out, ref, atol=1e-4, rtol=1e-4), "fused path mismatch"

    # Streamed path, exercised explicitly at a small shape (incl. row masking).
    x2 = jax.random.normal(kx2, (10, input_size), jnp.float32)
    out2 = jax.block_until_ready(jax.jit(_forward_streamed)(x2, params))
    ref2 = mlp_reference(x2, params)
    assert out2.shape == (10, 1)
    assert jnp.allclose(out2, ref2, atol=1e-4, rtol=1e-4), "streamed path mismatch"

    print("KERNEL_OK")
</pallas_src>

<mosaic_0001>
module attributes {stable_mosaic.version = 11 : i64} {
  func.func @_fused_kernel(%arg0: memref<8x32xf32, #tpu.memory_space<vmem>>, %arg1: memref<32x64xf32, #tpu.memory_space<vmem>>, %arg2: memref<1x64xf32, #tpu.memory_space<vmem>>, %arg3: memref<1x64xf32, #tpu.memory_space<vmem>>, %arg4: memref<1x64xf32, #tpu.memory_space<vmem>>, %arg5: memref<64x32xf32, #tpu.memory_space<vmem>>, %arg6: memref<1x32xf32, #tpu.memory_space<vmem>>, %arg7: memref<1x32xf32, #tpu.memory_space<vmem>>, %arg8: memref<1x32xf32, #tpu.memory_space<vmem>>, %arg9: memref<32x16xf32, #tpu.memory_space<vmem>>, %arg10: memref<1x16xf32, #tpu.memory_space<vmem>>, %arg11: memref<1x16xf32, #tpu.memory_space<vmem>>, %arg12: memref<1x16xf32, #tpu.memory_space<vmem>>, %arg13: memref<1x16xf32, #tpu.memory_space<vmem>>, %arg14: memref<1xf32, #tpu.memory_space<smem>>, %arg15: memref<8x1xf32, #tpu.memory_space<vmem>>) attributes {dimension_semantics = [], scalar_prefetch = 0 : i64, scratch_operands = 0 : i64, tpu.core_type = #tpu.core_type<tc>} {
    %c0 = arith.constant 0 : index
    %c0_0 = arith.constant 0 : index
    %0 = vector.load %arg0[%c0, %c0_0] : memref<8x32xf32, #tpu.memory_space<vmem>>, vector<8x32xf32>
    %c0_1 = arith.constant 0 : index
    %c0_2 = arith.constant 0 : index
    %1 = vector.load %arg1[%c0_1, %c0_2] : memref<32x64xf32, #tpu.memory_space<vmem>>, vector<32x64xf32>
    %cst = arith.constant dense<0.000000e+00> : vector<8x64xf32>
    %2 = tpu.matmul %0, %1, %cst {dimension_numbers = #tpu.dot_dimension_numbers<[1], [0], [0], [1], [0, 0, 1, 1], [], []>} : vector<8x32xf32>, vector<32x64xf32>, vector<8x64xf32> -> vector<8x64xf32>
    %c0_3 = arith.constant 0 : index
    %c0_4 = arith.constant 0 : index
    %3 = vector.load %arg2[%c0_3, %c0_4] : memref<1x64xf32, #tpu.memory_space<vmem>>, vector<1x64xf32>
    %4 = vector.broadcast %3 : vector<1x64xf32> to vector<8x64xf32>
    %5 = arith.addf %2, %4 : vector<8x64xf32>
    %cst_5 = arith.constant 0.000000e+00 : f32
    %6 = vector.broadcast %cst_5 : f32 to vector<8x64xf32>
    %7 = arith.maximumf %5, %6 : vector<8x64xf32>
    %cst_6 = arith.constant dense<0.000000e+00> : vector<64xf32>
    %8 = vector.multi_reduction <add>, %7, %cst_6 [0] : vector<8x64xf32> to vector<64xf32>
    %9 = vector.shape_cast %8 : vector<64xf32> to vector<1x64xf32>
    %cst_7 = arith.constant 1.250000e-01 : f32
    %10 = vector.broadcast %cst_7 : f32 to vector<1x64xf32>
    %11 = arith.mulf %9, %10 : vector<1x64xf32>
    %12 = vector.broadcast %11 : vector<1x64xf32> to vector<8x64xf32>
    %13 = arith.subf %7, %12 : vector<8x64xf32>
    %14 = arith.mulf %13, %13 : vector<8x64xf32>
    %cst_8 = arith.constant dense<0.000000e+00> : vector<64xf32>
    %15 = vector.multi_reduction <add>, %14, %cst_8 [0] : vector<8x64xf32> to vector<64xf32>
    %16 = vector.shape_cast %15 : vector<64xf32> to vector<1x64xf32>
    %cst_9 = arith.constant 1.250000e-01 : f32
    %17 = vector.broadcast %cst_9 : f32 to vector<1x64xf32>
    %18 = arith.mulf %16, %17 : vector<1x64xf32>
    %cst_10 = arith.constant 9.99999974E-6 : f32
    %19 = vector.broadcast %cst_10 : f32 to vector<1x64xf32>
    %20 = arith.addf %18, %19 : vector<1x64xf32>
    %21 = math.rsqrt %20 : vector<1x64xf32>
    %c0_11 = arith.constant 0 : index
    %c0_12 = arith.constant 0 : index
    %22 = vector.load %arg3[%c0_11, %c0_12] : memref<1x64xf32, #tpu.memory_space<vmem>>, vector<1x64xf32>
    %23 = arith.mulf %21, %22 : vector<1x64xf32>
    %24 = vector.broadcast %23 : vector<1x64xf32> to vector<8x64xf32>
    %25 = arith.mulf %13, %24 : vector<8x64xf32>
    %c0_13 = arith.constant 0 : index
    %c0_14 = arith.constant 0 : index
    %26 = vector.load %arg4[%c0_13, %c0_14] : memref<1x64xf32, #tpu.memory_space<vmem>>, vector<1x64xf32>
    %27 = vector.broadcast %26 : vector<1x64xf32> to vector<8x64xf32>
    %28 = arith.addf %25, %27 : vector<8x64xf32>
    %c0_15 = arith.constant 0 : index
    %c0_16 = arith.constant 0 : index
    %29 = vector.load %arg5[%c0_15, %c0_16] : memref<64x32xf32, #tpu.memory_space<vmem>>, vector<64x32xf32>
    %cst_17 = arith.constant dense<0.000000e+00> : vector<8x32xf32>
    %30 = tpu.matmul %28, %29, %cst_17 {dimension_numbers = #tpu.dot_dimension_numbers<[1], [0], [0], [1], [0, 0, 1, 1], [], []>} : vector<8x64xf32>, vector<64x32xf32>, vector<8x32xf32> -> vector<8x32xf32>
    %c0_18 = arith.constant 0 : index
    %c0_19 = arith.constant 0 : index
    %31 = vector.load %arg6[%c0_18, %c0_19] : memref<1x32xf32, #tpu.memory_space<vmem>>, vector<1x32xf32>
    %32 = vector.broadcast %31 : vector<1x32xf32> to vector<8x32xf32>
    %33 = arith.addf %30, %32 : vector<8x32xf32>
    %cst_20 = arith.constant 0.000000e+00 : f32
    %34 = vector.broadcast %cst_20 : f32 to vector<8x32xf32>
    %35 = arith.maximumf %33, %34 : vector<8x32xf32>
    %cst_21 = arith.constant dense<0.000000e+00> : vector<32xf32>
    %36 = vector.multi_reduction <add>, %35, %cst_21 [0] : vector<8x32xf32> to vector<32xf32>
    %37 = vector.shape_cast %36 : vector<32xf32> to vector<1x32xf32>
    %cst_22 = arith.constant 1.250000e-01 : f32
    %38 = vector.broadcast %cst_22 : f32 to vector<1x32xf32>
    %39 = arith.mulf %37, %38 : vector<1x32xf32>
    %40 = vector.broadcast %39 : vector<1x32xf32> to vector<8x32xf32>
    %41 = arith.subf %35, %40 : vector<8x32xf32>
    %42 = arith.mulf %41, %41 : vector<8x32xf32>
    %cst_23 = arith.constant dense<0.000000e+00> : vector<32xf32>
    %43 = vector.multi_reduction <add>, %42, %cst_23 [0] : vector<8x32xf32> to vector<32xf32>
    %44 = vector.shape_cast %43 : vector<32xf32> to vector<1x32xf32>
    %cst_24 = arith.constant 1.250000e-01 : f32
    %45 = vector.broadcast %cst_24 : f32 to vector<1x32xf32>
    %46 = arith.mulf %44, %45 : vector<1x32xf32>
    %cst_25 = arith.constant 9.99999974E-6 : f32
    %47 = vector.broadcast %cst_25 : f32 to vector<1x32xf32>
    %48 = arith.addf %46, %47 : vector<1x32xf32>
    %49 = math.rsqrt %48 : vector<1x32xf32>
    %c0_26 = arith.constant 0 : index
    %c0_27 = arith.constant 0 : index
    %50 = vector.load %arg7[%c0_26, %c0_27] : memref<1x32xf32, #tpu.memory_space<vmem>>, vector<1x32xf32>
    %51 = arith.mulf %49, %50 : vector<1x32xf32>
    %52 = vector.broadcast %51 : vector<1x32xf32> to vector<8x32xf32>
    %53 = arith.mulf %41, %52 : vector<8x32xf32>
    %c0_28 = arith.constant 0 : index
    %c0_29 = arith.constant 0 : index
    %54 = vector.load %arg8[%c0_28, %c0_29] : memref<1x32xf32, #tpu.memory_space<vmem>>, vector<1x32xf32>
    %55 = vector.broadcast %54 : vector<1x32xf32> to vector<8x32xf32>
    %56 = arith.addf %53, %55 : vector<8x32xf32>
    %c0_30 = arith.constant 0 : index
    %c0_31 = arith.constant 0 : index
    %57 = vector.load %arg9[%c0_30, %c0_31] : memref<32x16xf32, #tpu.memory_space<vmem>>, vector<32x16xf32>
    %cst_32 = arith.constant dense<0.000000e+00> : vector<8x16xf32>
    %58 = tpu.matmul %56, %57, %cst_32 {dimension_numbers = #tpu.dot_dimension_numbers<[1], [0], [0], [1], [0, 0, 1, 1], [], []>} : vector<8x32xf32>, vector<32x16xf32>, vector<8x16xf32> -> vector<8x16xf32>
    %c0_33 = arith.constant 0 : index
    %c0_34 = arith.constant 0 : index
    %59 = vector.load %arg10[%c0_33, %c0_34] : memref<1x16xf32, #tpu.memory_space<vmem>>, vector<1x16xf32>
    %60 = vector.broadcast %59 : vector<1x16xf32> to vector<8x16xf32>
    %61 = arith.addf %58, %60 : vector<8x16xf32>
    %cst_35 = arith.constant 0.000000e+00 : f32
    %62 = vector.broadcast %cst_35 : f32 to vector<8x16xf32>
    %63 = arith.maximumf %61, %62 : vector<8x16xf32>
    %cst_36 = arith.constant dense<0.000000e+00> : vector<16xf32>
    %64 = vector.multi_reduction <add>, %63, %cst_36 [0] : vector<8x16xf32> to vector<16xf32>
    %65 = vector.shape_cast %64 : vector<16xf32> to vector<1x16xf32>
    %cst_37 = arith.constant 1.250000e-01 : f32
    %66 = vector.broadcast %cst_37 : f32 to vector<1x16xf32>
    %67 = arith.mulf %65, %66 : vector<1x16xf32>
    %68 = vector.broadcast %67 : vector<1x16xf32> to vector<8x16xf32>
    %69 = arith.subf %63, %68 : vector<8x16xf32>
    %70 = arith.mulf %69, %69 : vector<8x16xf32>
    %cst_38 = arith.constant dense<0.000000e+00> : vector<16xf32>
    %71 = vector.multi_reduction <add>, %70, %cst_38 [0] : vector<8x16xf32> to vector<16xf32>
    %72 = vector.shape_cast %71 : vector<16xf32> to vector<1x16xf32>
    %cst_39 = arith.constant 1.250000e-01 : f32
    %73 = vector.broadcast %cst_39 : f32 to vector<1x16xf32>
    %74 = arith.mulf %72, %73 : vector<1x16xf32>
    %cst_40 = arith.constant 9.99999974E-6 : f32
    %75 = vector.broadcast %cst_40 : f32 to vector<1x16xf32>
    %76 = arith.addf %74, %75 : vector<1x16xf32>
    %77 = math.rsqrt %76 : vector<1x16xf32>
    %c0_41 = arith.constant 0 : index
    %c0_42 = arith.constant 0 : index
    %78 = vector.load %arg11[%c0_41, %c0_42] : memref<1x16xf32, #tpu.memory_space<vmem>>, vector<1x16xf32>
    %79 = arith.mulf %77, %78 : vector<1x16xf32>
    %80 = vector.broadcast %79 : vector<1x16xf32> to vector<8x16xf32>
    %81 = arith.mulf %69, %80 : vector<8x16xf32>
    %c0_43 = arith.constant 0 : index
    %c0_44 = arith.constant 0 : index
    %82 = vector.load %arg12[%c0_43, %c0_44] : memref<1x16xf32, #tpu.memory_space<vmem>>, vector<1x16xf32>
    %83 = vector.broadcast %82 : vector<1x16xf32> to vector<8x16xf32>
    %84 = arith.addf %81, %83 : vector<8x16xf32>
    %c0_45 = arith.constant 0 : index
    %c0_46 = arith.constant 0 : index
    %85 = vector.load %arg13[%c0_45, %c0_46] : memref<1x16xf32, #tpu.memory_space<vmem>>, vector<1x16xf32>
    %86 = vector.broadcast %85 : vector<1x16xf32> to vector<8x16xf32>
    %87 = arith.mulf %84, %86 : vector<8x16xf32>
    %cst_47 = arith.constant dense<0.000000e+00> : vector<8xf32>
    %88 = vector.multi_reduction <add>, %87, %cst_47 [1] : vector<8x16xf32> to vector<8xf32>
    %89 = vector.shape_cast %88 : vector<8xf32> to vector<8x1xf32>
    %c0_48 = arith.constant 0 : index
    %90 = memref.load %arg14[%c0_48] : memref<1xf32, #tpu.memory_space<smem>>
    %91 = vector.broadcast %90 : f32 to vector<8x1xf32>
    %92 = arith.addf %89, %91 : vector<8x1xf32>
    %93 = arith.negf %92 : vector<8x1xf32>
    %94 = math.exp %93 : vector<8x1xf32>
    %cst_49 = arith.constant 1.000000e+00 : f32
    %95 = vector.broadcast %cst_49 : f32 to vector<8x1xf32>
    %96 = arith.addf %95, %94 : vector<8x1xf32>
    %97 = arith.divf %95, %96 : vector<8x1xf32>
    %c0_50 = arith.constant 0 : index
    %c0_51 = arith.constant 0 : index
    %98 = vector.load %arg15[%c0_50, %c0_51] : memref<8x1xf32, #tpu.memory_space<vmem>>, vector<8x1xf32>
    tpu.vector_store %arg15[%c0_50, %c0_51], %97 {strides = array<i32>} : memref<8x1xf32, #tpu.memory_space<vmem>>, vector<8x1xf32>,
    return
  }
}

</mosaic_0001>

<llo_original>
// kernel: mlp_forward.1
$region0: #{mlp_forward.1}
  #allocation0 [shape = 'u32[]', space=smem, size = 0x4, offset = 0x4, fixed_abs, tag = 'smem constant byte address 0x4 - core index']
  #allocation1 [shape = 'u32[72,128]{1,0:T(1,128)}', space=vmem, size = 0x9000, scoped, tag = 'internal scratch']
  #allocation2 [shape = 'f32[1]{0:T(128)S(6)}', space=smem, size = 0x200, scoped, tag = 'scoped memory for mlp_forward.1']
  %s0 = inlined_call_operand.vmem [shape: f32[8,32], index: 0, kind: input, shape index: {}]
  %s1 = inlined_call_operand.vmem [shape: f32[32,64], index: 1, kind: input, shape index: {}]
  %s2 = inlined_call_operand.vmem [shape: f32[1,64], index: 2, kind: input, shape index: {}]
  %s3 = inlined_call_operand.vmem [shape: f32[1,64], index: 3, kind: input, shape index: {}]
  %s4 = inlined_call_operand.vmem [shape: f32[1,64], index: 4, kind: input, shape index: {}]
  %s5 = inlined_call_operand.vmem [shape: f32[64,32], index: 5, kind: input, shape index: {}]
  %s6 = inlined_call_operand.vmem [shape: f32[1,32], index: 6, kind: input, shape index: {}]
  %s7 = inlined_call_operand.vmem [shape: f32[1,32], index: 7, kind: input, shape index: {}]
  %s8 = inlined_call_operand.vmem [shape: f32[1,32], index: 8, kind: input, shape index: {}]
  %s9 = inlined_call_operand.vmem [shape: f32[32,16], index: 9, kind: input, shape index: {}]
  %s10 = inlined_call_operand.vmem [shape: f32[1,16], index: 10, kind: input, shape index: {}]
  %s11 = inlined_call_operand.vmem [shape: f32[1,16], index: 11, kind: input, shape index: {}]
  %s12 = inlined_call_operand.vmem [shape: f32[1,16], index: 12, kind: input, shape index: {}]
  %s13 = inlined_call_operand.vmem [shape: f32[1,16], index: 13, kind: input, shape index: {}]
  %s14 = inlined_call_operand.<no memory space> [shape: f32[1], index: 14, kind: input, shape index: {}]
  %s15 = inlined_call_operand.vmem [shape: f32[8,1], index: 15, kind: output, shape index: {}]
  %s16 = sld [smem:[#allocation0]]
  $region70: #{mlp_forward.1} parent=0
    _
  %s18 = ssub.s32 1, %s16
  %s19 = scalar_select 0, %s18, %s16
  %20 = sst [smem:[#allocation2]] %s14
  // Predicated region
  $region2: #{mlp_forward.1} parent=0 // pred_check
    _
  $region3: #{mlp_forward.1} parent=0 // pred_check_branch
    %22 = sbr.rel (0) target = $region5
  $region4: #{mlp_forward.1} parent=0 // pred_region
    _
  $region5: #{mlp_forward.1} parent=0 // pred_fallthru
    _
  // Predicated region
  $region6: #{mlp_forward.1} parent=0 // pred_check
    _
  $region7: #{mlp_forward.1} parent=0 // pred_check_branch
    %24 = sbr.rel (0) target = $region9
  $region8: #{mlp_forward.1} parent=0 // pred_region
    _
  $region9: #{mlp_forward.1} parent=0 // pred_fallthru
    _
  // Predicated region
  $region10: #{mlp_forward.1} parent=0 // pred_check
    _
  $region11: #{mlp_forward.1} parent=0 // pred_check_branch
    %26 = sbr.rel (0) target = $region13
  $region12: #{mlp_forward.1} parent=0 // pred_region
    _
  $region13: #{mlp_forward.1} parent=0 // pred_fallthru
    _
  // Predicated region
  $region14: #{mlp_forward.1} parent=0 // pred_check
    _
  $region15: #{mlp_forward.1} parent=0 // pred_check_branch
    %28 = sbr.rel (0) target = $region17
  $region16: #{mlp_forward.1} parent=0 // pred_region
    _
  $region17: #{mlp_forward.1} parent=0 // pred_fallthru
    _
  // Predicated region
  $region18: #{mlp_forward.1} parent=0 // pred_check
    _
  $region19: #{mlp_forward.1} parent=0 // pred_check_branch
    %30 = sbr.rel (0) target = $region21
  $region20: #{mlp_forward.1} parent=0 // pred_region
    _
  $region21: #{mlp_forward.1} parent=0 // pred_fallthru
    _
  // Predicated region
  $region22: #{mlp_forward.1} parent=0 // pred_check
    _
  $region23: #{mlp_forward.1} parent=0 // pred_check_branch
    %32 = sbr.rel (0) target = $region25
  $region24: #{mlp_forward.1} parent=0 // pred_region
    _
  $region25: #{mlp_forward.1} parent=0 // pred_fallthru
    _
  // Predicated region
  $region26: #{mlp_forward.1} parent=0 // pred_check
    _
  $region27: #{mlp_forward.1} parent=0 // pred_check_branch
    %34 = sbr.rel (0) target = $region29
  $region28: #{mlp_forward.1} parent=0 // pred_region
    _
  $region29: #{mlp_forward.1} parent=0 // pred_fallthru
    _
  // Predicated region
  $region30: #{mlp_forward.1} parent=0 // pred_check
    _
  $region31: #{mlp_forward.1} parent=0 // pred_check_branch
    %36 = sbr.rel (0) target = $region33
  $region32: #{mlp_forward.1} parent=0 // pred_region
    _
  $region33: #{mlp_forward.1} parent=0 // pred_fallthru
    _
  // Predicated region
  $region34: #{mlp_forward.1} parent=0 // pred_check
    _
  $region35: #{mlp_forward.1} parent=0 // pred_check_branch
    %38 = sbr.rel (0) target = $region37
  $region36: #{mlp_forward.1} parent=0 // pred_region
    _
  $region37: #{mlp_forward.1} parent=0 // pred_fallthru
    _
  // Predicated region
  $region38: #{mlp_forward.1} parent=0 // pred_check
    _
  $region39: #{mlp_forward.1} parent=0 // pred_check_branch
    %40 = sbr.rel (0) target = $region41
  $region40: #{mlp_forward.1} parent=0 // pred_region
    _
  $region41: #{mlp_forward.1} parent=0 // pred_fallthru
    _
  // Predicated region
  $region42: #{mlp_forward.1} parent=0 // pred_check
    _
  $region43: #{mlp_forward.1} parent=0 // pred_check_branch
    %42 = sbr.rel (0) target = $region45
  $region44: #{mlp_forward.1} parent=0 // pred_region
    _
  $region45: #{mlp_forward.1} parent=0 // pred_fallthru
    _
  // Predicated region
  $region46: #{mlp_forward.1} parent=0 // pred_check
    _
  $region47: #{mlp_forward.1} parent=0 // pred_check_branch
    %44 = sbr.rel (0) target = $region49
  $region48: #{mlp_forward.1} parent=0 // pred_region
    _
  $region49: #{mlp_forward.1} parent=0 // pred_fallthru
    _
  // Predicated region
  $region50: #{mlp_forward.1} parent=0 // pred_check
    _
  $region51: #{mlp_forward.1} parent=0 // pred_check_branch
    %46 = sbr.rel (0) target = $region53
  $region52: #{mlp_forward.1} parent=0 // pred_region
    _
  $region53: #{mlp_forward.1} parent=0 // pred_fallthru
    _
  // Predicated region
  $region54: #{mlp_forward.1} parent=0 // pred_check
    _
  $region55: #{mlp_forward.1} parent=0 // pred_check_branch
    %48 = sbr.rel (0) target = $region57
  $region56: #{mlp_forward.1} parent=0 // pred_region
    _
  $region57: #{mlp_forward.1} parent=0 // pred_fallthru
    _
  // Predicated region
  $region58: #{mlp_forward.1} parent=0 // pred_check
    _
  $region59: #{mlp_forward.1} parent=0 // pred_check_branch
    %50 = sbr.rel (0) target = $region61
  $region60: #{mlp_forward.1} parent=0 // pred_region
    _
  $region61: #{mlp_forward.1} parent=0 // pred_fallthru
    _
  %v51 = vld [vmem:[%s0] sm:$0xff]
  %v52 = vld [vmem:[%s1] sm:$0xff]
  %v53 = vld [vmem:[%s1 + $0x8] sm:$0xff]
  %v54 = vld [vmem:[%s1 + $0x10] sm:$0xff]
  %v55 = vld [vmem:[%s1 + $0x18] sm:$0xff]
  %v56 = vld [vmem:[%s2] sm:$0x1]
  %v58 = vperm.slane %v56, 0
  %vm60 = vcmask 261120
  %v62 = vsel %vm60, %v51, 0
  %64 = vmatpush.msra.mxu0 0.0
  %65 = vmatpush.msra.mxu0 0.0
  %66 = vmatpush.msra.mxu0 0.0
  %67 = vmatpush.msra.mxu0 0.0
  %68 = vmatpush.msra.mxu0 0.0
  %69 = vmatpush.msra.mxu0 0.0
  %70 = vmatpush.msra.mxu0 0.0
  %71 = vmatpush.msra.mxu0 0.0
  %72 = vmatpush.msra.mxu0 0.0
  %73 = vmatpush.msra.mxu0 0.0
  %74 = vmatpush.msra.mxu0 0.0
  %75 = vmatpush.msra.mxu0 0.0
  %76 = vmatpush.msra.mxu0 %v55
  %77 = vmatpush.msra.mxu0 %v54
  %78 = vmatpush.msra.mxu0 %v53
  %79 = vmatpush.msra.mxu0 %v52
  %80 = vmatmul.f32.gmra.mxu0 %v62
  %v81 = vpop.f32.mrf.mxu0
  %v82 = vadd.f32 %v58, %v81
  %83 = vdwg.mxu0
  %v84 = vmax.f32 %v82, 0.0
  %vm85 = vcmask 523264
  %v86 = vsel %vm85, %v84, 0.0
  %v87 = vrot.slane %v86, 4
  %v88 = vadd.f32 %v86, %v87
  %v89 = vrot.slane %v88, 2
  %v90 = vadd.f32 %v88, %v89
  %v91 = vrot.slane %v90, 1
  %v92 = vadd.f32 %v90, %v91
  %v93 = vmul.f32 %v92, 0.125
  %v94 = vsub.f32 %v84, %v93
  %v95 = vmul.f32 %v94, %v94
  %v96 = vsel %vm85, %v95, 0.0
  %v97 = vrot.slane %v96, 4
  %v98 = vadd.f32 %v96, %v97
  %v99 = vrot.slane %v98, 2
  %v100 = vadd.f32 %v98, %v99
  %v101 = vrot.slane %v100, 1
  %v102 = vadd.f32 %v100, %v101
  %v103 = vmul.f32 %v102, 0.125
  %v104 = vadd.f32 %v103, 1e-05
  %v105 = vrsqrt.pop %v104
  %v106 = vmul.f32 %v105, %v104
  %v107 = vmul.f32 %v106, %v105
  %v108 = vmul.f32 0.5, %v107
  %v109 = vsub.f32 1.5, %v108
  %v110 = vmul.f32 %v105, %v109
  %vm111 = vweird.f32 %v104
  %vm112 = vweird.f32 %v105
  %vm113 = vmor %vm111, %vm112
  %v114 = vsel %vm113, %v105, %v110
  %v115 = vld [vmem:[%s3] sm:$0x1]
  %v116 = vmul.f32 %v114, %v115
  %v117 = vperm.slane %v116, 0
  %v118 = vmul.f32 %v94, %v117
  %v119 = vld [vmem:[%s4] sm:$0x1]
  %v121 = vperm.slane %v119, 0
  %v123 = vadd.f32 %v118, %v121
  %v124 = vld [vmem:[%s5] sm:$0xff]
  %v125 = vld [vmem:[%s5 + $0x8] sm:$0xff]
  %v126 = vld [vmem:[%s5 + $0x10] sm:$0xff]
  %v127 = vld [vmem:[%s5 + $0x18] sm:$0xff]
  %v128 = vld [vmem:[%s5 + $0x20] sm:$0xff]
  %v129 = vld [vmem:[%s5 + $0x28] sm:$0xff]
  %v130 = vld [vmem:[%s5 + $0x30] sm:$0xff]
  %v131 = vld [vmem:[%s5 + $0x38] sm:$0xff]
  %v132 = vld [vmem:[%s6] sm:$0x1]
  %v134 = vperm.slane %v132, 0
  %v137 = vsel %vm85, %v123, 0
  %139 = vmatpush.msra.mxu0 0.0
  %140 = vmatpush.msra.mxu0 0.0
  %141 = vmatpush.msra.mxu0 0.0
  %142 = vmatpush.msra.mxu0 0.0
  %143 = vmatpush.msra.mxu0 0.0
  %144 = vmatpush.msra.mxu0 0.0
  %145 = vmatpush.msra.mxu0 0.0
  %146 = vmatpush.msra.mxu0 0.0
  %147 = vmatpush.msra.mxu0 %v131
  %148 = vmatpush.msra.mxu0 %v130
  %149 = vmatpush.msra.mxu0 %v129
  %150 = vmatpush.msra.mxu0 %v128
  %151 = vmatpush.msra.mxu0 %v127
  %152 = vmatpush.msra.mxu0 %v126
  %153 = vmatpush.msra.mxu0 %v125
  %154 = vmatpush.msra.mxu0 %v124
  %155 = vmatmul.f32.gmra.mxu0 %v137
  %v156 = vpop.f32.mrf.mxu0
  %v157 = vadd.f32 %v134, %v156
  %158 = vdwg.mxu0
  %v159 = vmax.f32 %v157, 0.0
  %v160 = vsel %vm60, %v159, 0.0
  %v161 = vrot.slane %v160, 4
  %v162 = vadd.f32 %v160, %v161
  %v163 = vrot.slane %v162, 2
  %v164 = vadd.f32 %v162, %v163
  %v165 = vrot.slane %v164, 1
  %v166 = vadd.f32 %v164, %v165
  %v167 = vmul.f32 %v166, 0.125
  %v168 = vsub.f32 %v159, %v167
  %v169 = vmul.f32 %v168, %v168
  %v170 = vsel %vm60, %v169, 0.0
  %v171 = vrot.slane %v170, 4
  %v172 = vadd.f32 %v170, %v171
  %v173 = vrot.slane %v172, 2
  %v174 = vadd.f32 %v172, %v173
  %v175 = vrot.slane %v174, 1
  %v176 = vadd.f32 %v174, %v175
  %v177 = vmul.f32 %v176, 0.125
  %v178 = vadd.f32 %v177, 1e-05
  %v179 = vrsqrt.pop %v178
  %v180 = vmul.f32 %v179, %v178
  %v181 = vmul.f32 %v180, %v179
  %v182 = vmul.f32 0.5, %v181
  %v183 = vsub.f32 1.5, %v182
  %v184 = vmul.f32 %v179, %v183
  %vm185 = vweird.f32 %v178
  %vm186 = vweird.f32 %v179
  %vm187 = vmor %vm185, %vm186
  %v188 = vsel %vm187, %v179, %v184
  %v189 = vld [vmem:[%s7] sm:$0x1]
  %v190 = vmul.f32 %v188, %v189
  %v191 = vperm.slane %v190, 0
  %v192 = vmul.f32 %v168, %v191
  %v193 = vld [vmem:[%s8] sm:$0x1]
  %v195 = vperm.slane %v193, 0
  %v197 = vadd.f32 %v192, %v195
  %v198 = vld [vmem:[%s9] sm:$0xff]
  %v199 = vld [vmem:[%s9 + $0x8] sm:$0xff]
  %v200 = vld [vmem:[%s9 + $0x10] sm:$0xff]
  %v201 = vld [vmem:[%s9 + $0x18] sm:$0xff]
  %v202 = vld [vmem:[%s10] sm:$0x1]
  %v204 = vperm.slane %v202, 0
  %v207 = vsel %vm60, %v197, 0
  %209 = vmatpush.msra.mxu0 0.0
  %210 = vmatpush.msra.mxu0 0.0
  %211 = vmatpush.msra.mxu0 0.0
  %212 = vmatpush.msra.mxu0 0.0
  %213 = vmatpush.msra.mxu0 0.0
  %214 = vmatpush.msra.mxu0 0.0
  %215 = vmatpush.msra.mxu0 0.0
  %216 = vmatpush.msra.mxu0 0.0
  %217 = vmatpush.msra.mxu0 0.0
  %218 = vmatpush.msra.mxu0 0.0
  %219 = vmatpush.msra.mxu0 0.0
  %220 = vmatpush.msra.mxu0 0.0
  %221 = vmatpush.msra.mxu0 %v201
  %222 = vmatpush.msra.mxu0 %v200
  %223 = vmatpush.msra.mxu0 %v199
  %224 = vmatpush.msra.mxu0 %v198
  %225 = vmatmul.f32.gmra.mxu0 %v207
  %v226 = vpop.f32.mrf.mxu0
  %v227 = vadd.f32 %v204, %v226
  %228 = vdwg.mxu0
  %v229 = vmax.f32 %v227, 0.0
  %vm230 = vcmask 130048
  %v231 = vsel %vm230, %v229, 0.0
  %v232 = vrot.slane %v231, 4
  %v233 = vadd.f32 %v231, %v232
  %v234 = vrot.slane %v233, 2
  %v235 = vadd.f32 %v233, %v234
  %v236 = vrot.slane %v235, 1
  %v237 = vadd.f32 %v235, %v236
  %v238 = vmul.f32 %v237, 0.125
  %v239 = vsub.f32 %v229, %v238
  %v240 = vmul.f32 %v239, %v239
  %v241 = vsel %vm230, %v240, 0.0
  %v242 = vrot.slane %v241, 4
  %v243 = vadd.f32 %v241, %v242
  %v244 = vrot.slane %v243, 2
  %v245 = vadd.f32 %v243, %v244
  %v246 = vrot.slane %v245, 1
  %v247 = vadd.f32 %v245, %v246
  %v248 = vmul.f32 %v247, 0.125
  %v249 = vadd.f32 %v248, 1e-05
  %v250 = vrsqrt.pop %v249
  %v251 = vmul.f32 %v250, %v249
  %v252 = vmul.f32 %v251, %v250
  %v253 = vmul.f32 0.5, %v252
  %v254 = vsub.f32 1.5, %v253
  %v255 = vmul.f32 %v250, %v254
  %vm256 = vweird.f32 %v249
  %vm257 = vweird.f32 %v250
  %vm258 = vmor %vm256, %vm257
  %v259 = vsel %vm258, %v250, %v255
  %v260 = vld [vmem:[%s11] sm:$0x1]
  %v261 = vmul.f32 %v259, %v260
  %v262 = vperm.slane %v261, 0
  %v263 = vmul.f32 %v239, %v262
  %v264 = vld [vmem:[%s12] sm:$0x1]
  %v266 = vperm.slane %v264, 0
  %v268 = vadd.f32 %v263, %v266
  %v269 = vld [vmem:[%s13] sm:$0x1]
  %v271 = vperm.slane %v269, 0
  %v273 = vmul.f32 %v268, %v271
  %v274 = vsel %vm230, %v273, 0.0
  %275 = vadd.xlane.f32.xlu0 %v274
  %v276 = vpop.xlane.xlu0 %275
  %s277 = sld [smem:[#allocation2]]
  %v278 = vstv %s277
  %v279 = vadd.f32 %v276, %v278
  %v280 = vxor.u32 %v279, 2147483648
  %v281 = vmul.f32 %v280, 1.442695
  %v282 = vpow.pop %v281
  %v283 = vadd.f32 %v282, 1.0
  %v284 = vrcp.pop %v283
  %v285 = vmul.f32 %v283, %v284
  %v286 = vsub.f32 1.0, %v285
  %v287 = vmul.f32 %v284, %v286
  %v288 = vadd.f32 %v284, %v287
  %vm289 = vweird.f32 %v283
  %vm290 = vweird.f32 %v284
  %vm291 = vmor %vm289, %vm290
  %v292 = vsel %vm291, %v284, %v288
  %v293 = vand.u32 2147483647, %v283
  %vm294 = vcmp.eq.f32.partialorder %v293, 8.507059e+37
  %v295 = vand.u32 %v283, 2147483648
  %v296 = vor.u32 1.1754944e-38, %v295
  %v297 = vsel %vm294, %v296, %v292
  %v298 = vmul.f32 1.0, %v297
  %vm299 = vcmask 7168
  %300 = vst.msk [vmem:[%s15] sm:$0xff] %vm299, %v298
  // Predicated region
  $region62: #{mlp_forward.1} parent=0 // pred_check
    _
  $region63: #{mlp_forward.1} parent=0 // pred_check_branch
    %302 = sbr.rel (0) target = $region65
  $region64: #{mlp_forward.1} parent=0 // pred_region
    _
  $region65: #{mlp_forward.1} parent=0 // pred_fallthru
    _
  // Predicated region
  $region66: #{mlp_forward.1} parent=0 // pred_check
    _
  $region67: #{mlp_forward.1} parent=0 // pred_check_branch
    %304 = sbr.rel (0) target = $region69
  $region68: #{mlp_forward.1} parent=0 // pred_region
    _
  $region69: #{mlp_forward.1} parent=0 // pred_fallthru
    _

</llo_original>
